<compile_context>
chip_gen: v7x
topology: tpu7x:2x2x1
jax: 0.10.0
libtpu: 0.0.40
codegen_flags: <defaults>
</compile_context>

<pallas_src>
from functools import partial

import jax
import jax.numpy as jnp
from jax.experimental import pallas as pl
from jax.experimental.pallas import tpu as pltpu


def _fused_conv_feature_kernel(x_ref, t1_ref, b1_ref, t2_ref, b2_ref,
                               feat1_ref, feat2_ref, xp_ref, a1p_ref,
                               *, H, W, Cin, C1, C2):
    """One batch image per grid step: conv3x3 -> ReLU -> conv3x3, all in VMEM.

    x_ref:     (1, H, W*Cin)       f32  width-folded (lane-dense) input image
    t1_ref:    (3, W*Cin, W*C1)    bf16 per-kh width-Toeplitz conv1 weights
    b1_ref:    (1, W*C1)           f32  width-tiled conv1 bias
    t2_ref:    (3, W*C1, W*C2)     bf16 per-kh width-Toeplitz conv2 weights
    b2_ref:    (1, W*C2)           f32  width-tiled conv2 bias
    feat1_ref: (H, W*C1)           f32  hooked conv1 output rows (lane-dense)
    feat2_ref: (H, W*C2)           f32  hooked conv2 output rows (lane-dense)
    xp_ref:    (H+2, W*Cin)        bf16 scratch: height-padded input
    a1p_ref:   (H+2, W*C1)         bf16 scratch: height-padded relu(conv1)
    """

    def band_conv(p_ref, t_ref, b_ref):
        # 3 row-tap matmuls; kw shift + width SAME-padding are inside t_ref.
        # LHS: sublane slice of the padded rows; output lanes = W*Cout (dense).
        acc = jnp.dot(p_ref[0:H, :], t_ref[0],
                      preferred_element_type=jnp.float32)
        acc = acc + jnp.dot(p_ref[1:H + 1, :], t_ref[1],
                            preferred_element_type=jnp.float32)
        acc = acc + jnp.dot(p_ref[2:H + 2, :], t_ref[2],
                            preferred_element_type=jnp.float32)
        return acc + b_ref[...]                      # f32 bias add (VPU, f32)

    # ---- height-pad the input into bf16 scratch: zero only the border rows.
    xp_ref[0:1, :] = jnp.zeros((1, W * Cin), jnp.bfloat16)
    xp_ref[H + 1:H + 2, :] = jnp.zeros((1, W * Cin), jnp.bfloat16)
    xp_ref[1:H + 1, :] = x_ref[0].astype(jnp.bfloat16)   # cast once

    # ---- conv1: 3 Toeplitz matmuls, result stored directly (no repack) ----
    f1 = band_conv(xp_ref, t1_ref, b1_ref)               # (H, W*C1) f32
    feat1_ref[...] = f1                                   # full-lane vst

    # ---- ReLU intermediate stays in VMEM, bf16, border rows zeroed only ----
    a1p_ref[0:1, :] = jnp.zeros((1, W * C1), jnp.bfloat16)
    a1p_ref[H + 1:H + 2, :] = jnp.zeros((1, W * C1), jnp.bfloat16)
    a1p_ref[1:H + 1, :] = jnp.maximum(f1, 0.0).astype(jnp.bfloat16)

    # ---- conv2 ----
    f2 = band_conv(a1p_ref, t2_ref, b2_ref)               # (H, W*C2) f32
    feat2_ref[...] = f2                                    # full-lane vst


def _width_toeplitz(w_hwio, W):
    """(3,3,Cin,Cout) HWIO kernel -> (3, W*Cin, W*Cout) banded block-Toeplitz.

    T[kh, w_in*Cin + cin, w_out*Cout + cout] = w[kh, w_in - w_out + 1, cin, cout]
    when the width tap index is in [0, 3), else 0 (this encodes the kw shift
    and SAME zero-padding along width).  Built once in the wrapper (glue).
    """
    KH, KW, Cin, Cout = w_hwio.shape
    w_in = jnp.arange(W)[:, None]                    # (W, 1)
    w_out = jnp.arange(W)[None, :]                   # (1, W)
    kw = w_in - w_out + 1                            # (W, W) width tap index
    valid = (kw >= 0) & (kw < KW)
    taps = w_hwio[:, jnp.clip(kw, 0, KW - 1)]        # (KH, W, W, Cin, Cout)
    taps = jnp.where(valid[None, :, :, None, None], taps, 0.0)
    # -> (KH, W_in, Cin, W_out, Cout) -> (KH, W*Cin, W*Cout)
    return taps.transpose(0, 1, 3, 2, 4).reshape(KH, W * Cin, W * Cout)


def fused_two_conv_features(x_nhwc, w1, b1, w2, b2):
    """Run the fused 2-conv model; return (feat1, feat2) pre-activation NHWC."""
    N, H, W, Cin = x_nhwc.shape
    C1 = w1.shape[-1]
    C2 = w2.shape[-1]

    # glue: Toeplitz weights (bf16 MXU operands) + width-tiled f32 biases.
    t1 = _width_toeplitz(w1.astype(jnp.float32), W).astype(jnp.bfloat16)
    t2 = _width_toeplitz(w2.astype(jnp.float32), W).astype(jnp.bfloat16)
    b1f = jnp.tile(b1.astype(jnp.float32), W).reshape(1, W * C1)
    b2f = jnp.tile(b2.astype(jnp.float32), W).reshape(1, W * C2)
    # glue: fold width & channels into the lane dim (free row-major reshape).
    x_folded = x_nhwc.astype(jnp.float32).reshape(N, H, W * Cin)

    kernel = partial(_fused_conv_feature_kernel,
                     H=H, W=W, Cin=Cin, C1=C1, C2=C2)

    feat1, feat2 = pl.pallas_call(
        kernel,
        out_shape=(jax.ShapeDtypeStruct((N * H, W * C1), jnp.float32),
                   jax.ShapeDtypeStruct((N * H, W * C2), jnp.float32)),
        grid=(N,),                                   # one image per grid step
        in_specs=[
            pl.BlockSpec((1, H, W * Cin), lambda n: (n, 0, 0)),
            pl.BlockSpec((3, W * Cin, W * C1), lambda n: (0, 0, 0)),
            pl.BlockSpec((1, W * C1), lambda n: (0, 0)),
            pl.BlockSpec((3, W * C1, W * C2), lambda n: (0, 0, 0)),
            pl.BlockSpec((1, W * C2), lambda n: (0, 0)),
        ],
        out_specs=(
            pl.BlockSpec((H, W * C1), lambda n: (n, 0)),
            pl.BlockSpec((H, W * C2), lambda n: (n, 0)),
        ),
        scratch_shapes=[
            pltpu.VMEM((H + 2, W * Cin), jnp.bfloat16),
            pltpu.VMEM((H + 2, W * C1), jnp.bfloat16),
        ],
        compiler_params=pltpu.CompilerParams(
            dimension_semantics=("parallel",),       # v7x: both TCs get work
            vmem_limit_bytes=32 * 1024 * 1024),
    )(x_folded, t1, b1f, t2, b2f)

    # glue: lane-dense 2-D outputs back to NHWC (HBM-side row-major reshape).
    return feat1.reshape(N, H, W, C1), feat2.reshape(N, H, W, C2)


class FeatureExtractor:
    """JAX/Pallas analogue of the PyTorch FeatureExtractor.

    `params` plays the role of `model`; `layers` are the hooked layer names.
    Calling the extractor runs the full model and returns {layer: feature},
    where each feature is that conv module's output (NCHW, pre-activation) —
    exactly what a forward hook on the conv module would capture.
    """
    # TODO(synk): the dynamic hook-registration mechanism itself is host-side
    # Python in PyTorch; here the hooked layers are fixed to the conv outputs.

    def __init__(self, params, layers):
        self.params = params
        self.layers = tuple(layers)
        self._features = {layer: jnp.empty((0,), jnp.float32) for layer in layers}

    def __call__(self, x_nchw):
        x = jnp.transpose(x_nchw, (0, 2, 3, 1))          # NCHW -> NHWC
        w1, b1 = self.params["conv1"]
        w2, b2 = self.params["conv2"]
        feat1, feat2 = fused_two_conv_features(x, w1, b1, w2, b2)
        all_feats = {
            "conv1": jnp.transpose(feat1, (0, 3, 1, 2)),  # back to NCHW
            "conv2": jnp.transpose(feat2, (0, 3, 1, 2)),
        }
        for layer in self.layers:                         # "hook" captures
            self._features[layer] = all_feats[layer]
        return dict(self._features)


def _reference_conv(x_nchw, w_hwio, b, quantize=True):
    """Plain-JAX NCHW reference; optionally bf16-quantize operands to mirror
    the kernel's MXU inputs so the check stays tight."""
    if quantize:
        x_nchw = x_nchw.astype(jnp.bfloat16).astype(jnp.float32)
        w_hwio = w_hwio.astype(jnp.bfloat16).astype(jnp.float32)
    out = jax.lax.conv_general_dilated(
        x_nchw, jnp.transpose(w_hwio, (3, 2, 0, 1)),      # HWIO -> OIHW
        window_strides=(1, 1), padding="SAME",
        dimension_numbers=("NCHW", "OIHW", "NCHW"),
        precision=jax.lax.Precision.HIGHEST)
    return out + b.reshape(1, -1, 1, 1)


if __name__ == "__main__":
    key = jax.random.PRNGKey(0)
    k1, k2, k3, k4, kx = jax.random.split(key, 5)

    N, Cin, H, W = 2, 4, 16, 16
    C1, C2 = 8, 16

    # Deterministic synthetic parameters (roughly Kaiming-scaled).
    params = {
        "conv1": (jax.random.normal(k1, (3, 3, Cin, C1), jnp.float32)
                  / jnp.sqrt(9.0 * Cin),
                  0.01 * jax.random.normal(k2, (C1,), jnp.float32)),
        "conv2": (jax.random.normal(k3, (3, 3, C1, C2), jnp.float32)
                  / jnp.sqrt(9.0 * C1),
                  0.01 * jax.random.normal(k4, (C2,), jnp.float32)),
    }

    x = jax.random.normal(kx, (N, Cin, H, W), jnp.float32)

    extractor = FeatureExtractor(params, layers=("conv1", "conv2"))
    features = extractor(x)
    for v in features.values():
        jax.block_until_ready(v)

    # Sanity checks.  Quantized reference mirrors the kernel's bf16 MXU
    # operands (tight); the f32-exact conv1 check (looser) guards against
    # layout bugs hiding behind quantization noise.
    ref1_q = _reference_conv(x, *params["conv1"], quantize=True)
    ref2_q = _reference_conv(jnp.maximum(ref1_q, 0.0), *params["conv2"],
                             quantize=True)
    ref1_f32 = _reference_conv(x, *params["conv1"], quantize=False)

    assert features["conv1"].shape == (N, C1, H, W)
    assert features["conv2"].shape == (N, C2, H, W)
    assert jnp.allclose(features["conv1"], ref1_q, atol=1e-2, rtol=1e-2)
    assert jnp.allclose(features["conv2"], ref2_q, atol=1e-2, rtol=1e-2)
    assert jnp.allclose(features["conv1"], ref1_f32, atol=5e-2, rtol=5e-2)

    print("KERNEL_OK")
</pallas_src>

<mosaic_0001>
module attributes {stable_mosaic.version = 11 : i64} {
  func.func @_fused_conv_feature_kernel(%arg0: i32, %arg1: memref<1x16x64xf32, #tpu.memory_space<vmem>>, %arg2: memref<3x64x128xbf16, #tpu.memory_space<vmem>>, %arg3: memref<1x128xf32, #tpu.memory_space<vmem>>, %arg4: memref<3x128x256xbf16, #tpu.memory_space<vmem>>, %arg5: memref<1x256xf32, #tpu.memory_space<vmem>>, %arg6: memref<16x128xf32, #tpu.memory_space<vmem>>, %arg7: memref<16x256xf32, #tpu.memory_space<vmem>>, %arg8: memref<18x64xbf16, #tpu.memory_space<vmem>>, %arg9: memref<18x128xbf16, #tpu.memory_space<vmem>>) attributes {dimension_semantics = [#tpu.dimension_semantics<parallel>], iteration_bounds = array<i64: 2>, scalar_prefetch = 0 : i64, scratch_operands = 2 : i64, tpu.core_type = #tpu.core_type<tc>, window_params = [{transform_indices = @transform_0, window_bounds = array<i64: 1, 16, 64>}, {pipeline_mode = #tpu.pipeline_mode<synchronous>, transform_indices = @transform_1, window_bounds = array<i64: 3, 64, 128>}, {pipeline_mode = #tpu.pipeline_mode<synchronous>, transform_indices = @transform_2, window_bounds = array<i64: 1, 128>}, {pipeline_mode = #tpu.pipeline_mode<synchronous>, transform_indices = @transform_3, window_bounds = array<i64: 3, 128, 256>}, {pipeline_mode = #tpu.pipeline_mode<synchronous>, transform_indices = @transform_4, window_bounds = array<i64: 1, 256>}, {transform_indices = @transform_5, window_bounds = array<i64: 16, 128>}, {transform_indices = @transform_6, window_bounds = array<i64: 16, 256>}]} {
    %cst = arith.constant 0.000000e+00 : bf16
    %0 = vector.broadcast %cst : bf16 to vector<1x64xbf16>
    %c0 = arith.constant 0 : index
    %c0_0 = arith.constant 0 : index
    %1 = vector.load %arg8[%c0, %c0_0] : memref<18x64xbf16, #tpu.memory_space<vmem>>, vector<1x64xbf16>
    tpu.vector_store %arg8[%c0, %c0_0], %0 {strides = array<i32>} : memref<18x64xbf16, #tpu.memory_space<vmem>>, vector<1x64xbf16>,
    %cst_1 = arith.constant 0.000000e+00 : bf16
    %2 = vector.broadcast %cst_1 : bf16 to vector<1x64xbf16>
    %c17 = arith.constant 17 : index
    %c0_2 = arith.constant 0 : index
    %3 = vector.load %arg8[%c17, %c0_2] : memref<18x64xbf16, #tpu.memory_space<vmem>>, vector<1x64xbf16>
    tpu.vector_store %arg8[%c17, %c0_2], %2 {strides = array<i32>} : memref<18x64xbf16, #tpu.memory_space<vmem>>, vector<1x64xbf16>,
    %c0_3 = arith.constant 0 : index
    %c0_4 = arith.constant 0 : index
    %c0_5 = arith.constant 0 : index
    %4 = vector.load %arg1[%c0_3, %c0_4, %c0_5] : memref<1x16x64xf32, #tpu.memory_space<vmem>>, vector<1x16x64xf32>
    %5 = vector.shape_cast %4 : vector<1x16x64xf32> to vector<16x64xf32>
    %6 = arith.truncf %5 : vector<16x64xf32> to vector<16x64xbf16>
    %c1 = arith.constant 1 : index
    %c0_6 = arith.constant 0 : index
    %7 = vector.load %arg8[%c1, %c0_6] : memref<18x64xbf16, #tpu.memory_space<vmem>>, vector<16x64xbf16>
    tpu.vector_store %arg8[%c1, %c0_6], %6 {strides = array<i32>} : memref<18x64xbf16, #tpu.memory_space<vmem>>, vector<16x64xbf16>,
    %c0_7 = arith.constant 0 : index
    %c0_8 = arith.constant 0 : index
    %8 = vector.load %arg8[%c0_7, %c0_8] : memref<18x64xbf16, #tpu.memory_space<vmem>>, vector<16x64xbf16>
    %c0_9 = arith.constant 0 : index
    %c0_10 = arith.constant 0 : index
    %c0_11 = arith.constant 0 : index
    %9 = vector.load %arg2[%c0_9, %c0_10, %c0_11] : memref<3x64x128xbf16, #tpu.memory_space<vmem>>, vector<1x64x128xbf16>
    %10 = vector.shape_cast %9 : vector<1x64x128xbf16> to vector<64x128xbf16>
    %cst_12 = arith.constant dense<0.000000e+00> : vector<16x128xf32>
    %11 = tpu.matmul %8, %10, %cst_12 {dimension_numbers = #tpu.dot_dimension_numbers<[1], [0], [0], [1], [0, 0, 1, 1], [], []>} : vector<16x64xbf16>, vector<64x128xbf16>, vector<16x128xf32> -> vector<16x128xf32>
    %c1_13 = arith.constant 1 : index
    %c0_14 = arith.constant 0 : index
    %12 = vector.load %arg8[%c1_13, %c0_14] : memref<18x64xbf16, #tpu.memory_space<vmem>>, vector<16x64xbf16>
    %c1_15 = arith.constant 1 : index
    %c0_16 = arith.constant 0 : index
    %c0_17 = arith.constant 0 : index
    %13 = vector.load %arg2[%c1_15, %c0_16, %c0_17] : memref<3x64x128xbf16, #tpu.memory_space<vmem>>, vector<1x64x128xbf16>
    %14 = vector.shape_cast %13 : vector<1x64x128xbf16> to vector<64x128xbf16>
    %cst_18 = arith.constant dense<0.000000e+00> : vector<16x128xf32>
    %15 = tpu.matmul %12, %14, %cst_18 {dimension_numbers = #tpu.dot_dimension_numbers<[1], [0], [0], [1], [0, 0, 1, 1], [], []>} : vector<16x64xbf16>, vector<64x128xbf16>, vector<16x128xf32> -> vector<16x128xf32>
    %16 = arith.addf %11, %15 : vector<16x128xf32>
    %c2 = arith.constant 2 : index
    %c0_19 = arith.constant 0 : index
    %17 = vector.load %arg8[%c2, %c0_19] : memref<18x64xbf16, #tpu.memory_space<vmem>>, vector<16x64xbf16>
    %c2_20 = arith.constant 2 : index
    %c0_21 = arith.constant 0 : index
    %c0_22 = arith.constant 0 : index
    %18 = vector.load %arg2[%c2_20, %c0_21, %c0_22] : memref<3x64x128xbf16, #tpu.memory_space<vmem>>, vector<1x64x128xbf16>
    %19 = vector.shape_cast %18 : vector<1x64x128xbf16> to vector<64x128xbf16>
    %cst_23 = arith.constant dense<0.000000e+00> : vector<16x128xf32>
    %20 = tpu.matmul %17, %19, %cst_23 {dimension_numbers = #tpu.dot_dimension_numbers<[1], [0], [0], [1], [0, 0, 1, 1], [], []>} : vector<16x64xbf16>, vector<64x128xbf16>, vector<16x128xf32> -> vector<16x128xf32>
    %21 = arith.addf %16, %20 : vector<16x128xf32>
    %c0_24 = arith.constant 0 : index
    %c0_25 = arith.constant 0 : index
    %22 = vector.load %arg3[%c0_24, %c0_25] : memref<1x128xf32, #tpu.memory_space<vmem>>, vector<1x128xf32>
    %23 = vector.broadcast %22 : vector<1x128xf32> to vector<16x128xf32>
    %24 = arith.addf %21, %23 : vector<16x128xf32>
    %c0_26 = arith.constant 0 : index
    %c0_27 = arith.constant 0 : index
    %25 = vector.load %arg6[%c0_26, %c0_27] : memref<16x128xf32, #tpu.memory_space<vmem>>, vector<16x128xf32>
    tpu.vector_store %arg6[%c0_26, %c0_27], %24 {strides = array<i32>} : memref<16x128xf32, #tpu.memory_space<vmem>>, vector<16x128xf32>,
    %cst_28 = arith.constant 0.000000e+00 : bf16
    %26 = vector.broadcast %cst_28 : bf16 to vector<1x128xbf16>
    %c0_29 = arith.constant 0 : index
    %c0_30 = arith.constant 0 : index
    %27 = vector.load %arg9[%c0_29, %c0_30] : memref<18x128xbf16, #tpu.memory_space<vmem>>, vector<1x128xbf16>
    tpu.vector_store %arg9[%c0_29, %c0_30], %26 {strides = array<i32>} : memref<18x128xbf16, #tpu.memory_space<vmem>>, vector<1x128xbf16>,
    %cst_31 = arith.constant 0.000000e+00 : bf16
    %28 = vector.broadcast %cst_31 : bf16 to vector<1x128xbf16>
    %c17_32 = arith.constant 17 : index
    %c0_33 = arith.constant 0 : index
    %29 = vector.load %arg9[%c17_32, %c0_33] : memref<18x128xbf16, #tpu.memory_space<vmem>>, vector<1x128xbf16>
    tpu.vector_store %arg9[%c17_32, %c0_33], %28 {strides = array<i32>} : memref<18x128xbf16, #tpu.memory_space<vmem>>, vector<1x128xbf16>,
    %cst_34 = arith.constant 0.000000e+00 : f32
    %30 = vector.broadcast %cst_34 : f32 to vector<16x128xf32>
    %31 = arith.maximumf %24, %30 : vector<16x128xf32>
    %32 = arith.truncf %31 : vector<16x128xf32> to vector<16x128xbf16>
    %c1_35 = arith.constant 1 : index
    %c0_36 = arith.constant 0 : index
    %33 = vector.load %arg9[%c1_35, %c0_36] : memref<18x128xbf16, #tpu.memory_space<vmem>>, vector<16x128xbf16>
    tpu.vector_store %arg9[%c1_35, %c0_36], %32 {strides = array<i32>} : memref<18x128xbf16, #tpu.memory_space<vmem>>, vector<16x128xbf16>,
    %c0_37 = arith.constant 0 : index
    %c0_38 = arith.constant 0 : index
    %34 = vector.load %arg9[%c0_37, %c0_38] : memref<18x128xbf16, #tpu.memory_space<vmem>>, vector<16x128xbf16>
    %c0_39 = arith.constant 0 : index
    %c0_40 = arith.constant 0 : index
    %c0_41 = arith.constant 0 : index
    %35 = vector.load %arg4[%c0_39, %c0_40, %c0_41] : memref<3x128x256xbf16, #tpu.memory_space<vmem>>, vector<1x128x256xbf16>
    %36 = vector.shape_cast %35 : vector<1x128x256xbf16> to vector<128x256xbf16>
    %cst_42 = arith.constant dense<0.000000e+00> : vector<16x256xf32>
    %37 = tpu.matmul %34, %36, %cst_42 {dimension_numbers = #tpu.dot_dimension_numbers<[1], [0], [0], [1], [0, 0, 1, 1], [], []>} : vector<16x128xbf16>, vector<128x256xbf16>, vector<16x256xf32> -> vector<16x256xf32>
    %c1_43 = arith.constant 1 : index
    %c0_44 = arith.constant 0 : index
    %38 = vector.load %arg9[%c1_43, %c0_44] : memref<18x128xbf16, #tpu.memory_space<vmem>>, vector<16x128xbf16>
    %c1_45 = arith.constant 1 : index
    %c0_46 = arith.constant 0 : index
    %c0_47 = arith.constant 0 : index
    %39 = vector.load %arg4[%c1_45, %c0_46, %c0_47] : memref<3x128x256xbf16, #tpu.memory_space<vmem>>, vector<1x128x256xbf16>
    %40 = vector.shape_cast %39 : vector<1x128x256xbf16> to vector<128x256xbf16>
    %cst_48 = arith.constant dense<0.000000e+00> : vector<16x256xf32>
    %41 = tpu.matmul %38, %40, %cst_48 {dimension_numbers = #tpu.dot_dimension_numbers<[1], [0], [0], [1], [0, 0, 1, 1], [], []>} : vector<16x128xbf16>, vector<128x256xbf16>, vector<16x256xf32> -> vector<16x256xf32>
    %42 = arith.addf %37, %41 : vector<16x256xf32>
    %c2_49 = arith.constant 2 : index
    %c0_50 = arith.constant 0 : index
    %43 = vector.load %arg9[%c2_49, %c0_50] : memref<18x128xbf16, #tpu.memory_space<vmem>>, vector<16x128xbf16>
    %c2_51 = arith.constant 2 : index
    %c0_52 = arith.constant 0 : index
    %c0_53 = arith.constant 0 : index
    %44 = vector.load %arg4[%c2_51, %c0_52, %c0_53] : memref<3x128x256xbf16, #tpu.memory_space<vmem>>, vector<1x128x256xbf16>
    %45 = vector.shape_cast %44 : vector<1x128x256xbf16> to vector<128x256xbf16>
    %cst_54 = arith.constant dense<0.000000e+00> : vector<16x256xf32>
    %46 = tpu.matmul %43, %45, %cst_54 {dimension_numbers = #tpu.dot_dimension_numbers<[1], [0], [0], [1], [0, 0, 1, 1], [], []>} : vector<16x128xbf16>, vector<128x256xbf16>, vector<16x256xf32> -> vector<16x256xf32>
    %47 = arith.addf %42, %46 : vector<16x256xf32>
    %c0_55 = arith.constant 0 : index
    %c0_56 = arith.constant 0 : index
    %48 = vector.load %arg5[%c0_55, %c0_56] : memref<1x256xf32, #tpu.memory_space<vmem>>, vector<1x256xf32>
    %49 = vector.broadcast %48 : vector<1x256xf32> to vector<16x256xf32>
    %50 = arith.addf %47, %49 : vector<16x256xf32>
    %c0_57 = arith.constant 0 : index
    %c0_58 = arith.constant 0 : index
    %51 = vector.load %arg7[%c0_57, %c0_58] : memref<16x256xf32, #tpu.memory_space<vmem>>, vector<16x256xf32>
    tpu.vector_store %arg7[%c0_57, %c0_58], %50 {strides = array<i32>} : memref<16x256xf32, #tpu.memory_space<vmem>>, vector<16x256xf32>,
    return
  }
  func.func @transform_0(%arg0: i32) -> (i32, i32, i32) {
    %c0_i32 = arith.constant 0 : i32
    %c0_i32_0 = arith.constant 0 : i32
    %c0_i32_1 = arith.constant 0 : i32
    return %arg0, %c0_i32, %c0_i32_0 : i32, i32, i32
  }
  func.func @transform_1(%arg0: i32) -> (i32, i32, i32) {
    %c0_i32 = arith.constant 0 : i32
    %c0_i32_0 = arith.constant 0 : i32
    %c0_i32_1 = arith.constant 0 : i32
    %c0_i32_2 = arith.constant 0 : i32
    return %c0_i32, %c0_i32_0, %c0_i32_1 : i32, i32, i32
  }
  func.func @transform_2(%arg0: i32) -> (i32, i32) {
    %c0_i32 = arith.constant 0 : i32
    %c0_i32_0 = arith.constant 0 : i32
    %c0_i32_1 = arith.constant 0 : i32
    return %c0_i32, %c0_i32_0 : i32, i32
  }
  func.func @transform_3(%arg0: i32) -> (i32, i32, i32) {
    %c0_i32 = arith.constant 0 : i32
    %c0_i32_0 = arith.constant 0 : i32
    %c0_i32_1 = arith.constant 0 : i32
    %c0_i32_2 = arith.constant 0 : i32
    return %c0_i32, %c0_i32_0, %c0_i32_1 : i32, i32, i32
  }
  func.func @transform_4(%arg0: i32) -> (i32, i32) {
    %c0_i32 = arith.constant 0 : i32
    %c0_i32_0 = arith.constant 0 : i32
    %c0_i32_1 = arith.constant 0 : i32
    return %c0_i32, %c0_i32_0 : i32, i32
  }
  func.func @transform_5(%arg0: i32) -> (i32, i32) {
    %c0_i32 = arith.constant 0 : i32
    %c0_i32_0 = arith.constant 0 : i32
    return %arg0, %c0_i32 : i32, i32
  }
  func.func @transform_6(%arg0: i32) -> (i32, i32) {
    %c0_i32 = arith.constant 0 : i32
    %c0_i32_0 = arith.constant 0 : i32
    return %arg0, %c0_i32 : i32, i32
  }
}

</mosaic_0001>

<llo_original>
// kernel: tpu_custom_call.1
$region0: #{tpu_custom_call.1}
  #allocation0 [shape = 'u32[]', space=smem, size = 0x4, offset = 0x4, fixed_abs, tag = 'smem constant byte address 0x4 - core index']
  #allocation1 [shape = 'u32[144,128]{1,0:T(1,128)}', space=vmem, size = 0x12000, scoped, tag = 'internal scratch']
  #allocation2 [shape = 'bf16[18,64]{1,0:T(8,128)(2,1)}', space=vmem, size = 0x1800, scoped, tag = 'scratch operand']
  #allocation3 [shape = 'bf16[18,128]{1,0:T(8,128)(2,1)}', space=vmem, size = 0x1800, scoped, tag = 'scratch operand']
  %s0 = inlined_call_operand.hbm [shape: f32[2,16,64], index: 0, kind: input, shape index: {}]
  %s1 = inlined_call_operand.hbm [shape: bf16[3,64,128], index: 1, kind: input, shape index: {}]
  %s2 = inlined_call_operand.vmem [shape: f32[1,128], index: 2, kind: input, shape index: {}]
  %s3 = inlined_call_operand.hbm [shape: bf16[3,128,256], index: 3, kind: input, shape index: {}]
  %s4 = inlined_call_operand.vmem [shape: f32[1,256], index: 4, kind: input, shape index: {}]
  %s5 = inlined_call_operand.hbm [shape: f32[32,128], index: 5, kind: output, shape index: {0}]
  %s6 = inlined_call_operand.hbm [shape: f32[32,256], index: 6, kind: output, shape index: {1}]
  %7 = xla_tuple %s5, %s6
  %s8 = sld [smem:[#allocation0]]
  $region73: #{tpu_custom_call.1} parent=0
    _
  %s10 = ssub.s32 1, %s8
  %s11 = scalar_select 0, %s10, %s8
  $region1: #{tpu_custom_call.1} parent=0
    #allocation4 [shape = 'u8[16384]{0}', space=vmem, size = 0x4000, scoped, tag = 'input window, operand 0']
    #allocation5 [shape = 's32[2]{0}', space=sflag, size = 0x8, scoped, tag = 'scoped memory for tpu_custom_call.1']
    #allocation6 [shape = 's32[2]{0}', space=sflag, size = 0x8, scoped, tag = 'scoped memory for tpu_custom_call.1']
    #allocation7 [shape = 'u8[49152]{0}', space=vmem, size = 0xc000, scoped, tag = 'input window, operand 1, single buffered']
    #allocation8 [shape = 's32[1]{0}', space=sflag, size = 0x4, scoped, tag = 'scoped memory for tpu_custom_call.1']
    #allocation9 [shape = 'u8[196608]{0}', space=vmem, size = 0x30000, scoped, tag = 'input window, operand 3, single buffered']
    #allocation10 [shape = 'u8[16384]{0}', space=vmem, size = 0x4000, scoped, tag = 'output window, operand 0']
    #allocation11 [shape = 'u8[32768]{0}', space=vmem, size = 0x8000, scoped, tag = 'output window, operand 1']
    #allocation12 [shape = 's32[2]{0}', space=sflag, size = 0x8, scoped, tag = 'scoped memory for tpu_custom_call.1']
    %12 = vsyncpa [#allocation5], 0
    %s13 = scalar_lea.sflag [#allocation5], 1
    %14 = vsyncpa %s13, 0
    %15 = vsyncpa [#allocation8], 0
    %16 = vsyncpa [#allocation6], 0
    %s17 = scalar_lea.sflag [#allocation6], 1
    %18 = vsyncpa %s17, 0
    %19 = vsyncpa [#allocation12], 0
    %s20 = scalar_lea.sflag [#allocation12], 1
    %21 = vsyncpa %s20, 0
    loop: start=0, step=1, limit=4
    $region2: #{tpu_custom_call.1} parent=1 // loop_pre_header
      _
    $region3: #{tpu_custom_call.1} parent=1 // loop_header
      %s23 = sphi 0, %s27
      %p24 = scmp.ge.s32.totalorder %s23, 4
      %s33 = sphi 0, %s35
      %s36 = sphi 0, %s33
      %s37 = sphi 0, %s36
      %s53 = sphi 0, %s37
      %s57 = sphi 0, %s57
      %s59 = sphi 0, %s57
      %s60 = sphi 0, %s59
      %s74 = sphi 0, %s60
      %s78 = sphi 0, %s78
      %s80 = sphi 0, %s78
      %s81 = sphi 0, %s80
      %s95 = sphi 0, %s81
      %s99 = sphi 0, %s99
      %s101 = sphi 0, %s99
      %s102 = sphi 0, %s101
      %s116 = sphi 0, %s102
      %s120 = sphi 0, %s120
      %s122 = sphi 0, %s120
      %s123 = sphi 0, %s122
      %s137 = sphi 0, %s123
      %s143 = sphi 0, %s145
      %s146 = sphi 0, %s143
      %s147 = sphi 0, %s146
      %s163 = sphi 0, %s147
      %s169 = sphi 0, %s171
      %s172 = sphi 0, %s169
      %s173 = sphi 0, %s172
      %s189 = sphi 0, %s173
    $region4: #{tpu_custom_call.1} parent=1 // loop_header_branch
      %26 = sbr.rel (%p24) target = $region8
    $region5: #{tpu_custom_call.1} parent=1 // loop_body
      %s28 = ssub.s32 %s23, 1
      %s29 = ssub.s32 %s23, 2
      %s30 = sadd.s32 %s23, 1
      %s31 = ssub.s32 %s23, %s30
      %p32 = scmp.eq.s32.totalorder %s31, 0
      %s34 = sadd.s32 %s33, 1
      %s35 = scalar_select %p32, %s33, %s34
      %p38 = pneg %p32
      %p39 = scmp.eq.s32.totalorder %s23, 1
      %p40 = por %p38, %p39
      %p41 = scmp.ne.s32.totalorder %s33, %s36
      %p42 = scmp.eq.s32.totalorder %s23, 0
      %p43 = por %p41, %p42
      %p44 = scmp.ne.s32.totalorder %s33, %s36
      %p45 = scmp.eq.s32.totalorder %s28, 1
      %p46 = por %p44, %p45
      %p47 = scmp.ne.s32.totalorder %s36, %s37
      %p48 = scmp.eq.s32.totalorder %s28, 0
      %p49 = por %p47, %p48
      %p50 = scmp.ne.s32.totalorder %s36, %s37
      %p51 = scmp.eq.s32.totalorder %s29, 1
      %p52 = por %p50, %p51
      %p54 = scmp.ne.s32.totalorder %s37, %s53
      %p55 = scmp.eq.s32.totalorder %s29, 0
      %p56 = por %p54, %p55
      %s58 = sadd.s32 %s57, 1
      %p61 = scmp.eq.s32.totalorder %s23, 1
      %p62 = scmp.ne.s32.totalorder %s57, %s59
      %p63 = scmp.eq.s32.totalorder %s23, 0
      %p64 = por %p62, %p63
      %p65 = scmp.ne.s32.totalorder %s57, %s59
      %p66 = scmp.eq.s32.totalorder %s28, 1
      %p67 = por %p65, %p66
      %p68 = scmp.ne.s32.totalorder %s59, %s60
      %p69 = scmp.eq.s32.totalorder %s28, 0
      %p70 = por %p68, %p69
      %p71 = scmp.ne.s32.totalorder %s59, %s60
      %p72 = scmp.eq.s32.totalorder %s29, 1
      %p73 = por %p71, %p72
      %p75 = scmp.ne.s32.totalorder %s60, %s74
      %p76 = scmp.eq.s32.totalorder %s29, 0
      %p77 = por %p75, %p76
      %s79 = sadd.s32 %s78, 1
      %p82 = scmp.eq.s32.totalorder %s23, 1
      %p83 = scmp.ne.s32.totalorder %s78, %s80
      %p84 = scmp.eq.s32.totalorder %s23, 0
      %p85 = por %p83, %p84
      %p86 = scmp.ne.s32.totalorder %s78, %s80
      %p87 = scmp.eq.s32.totalorder %s28, 1
      %p88 = por %p86, %p87
      %p89 = scmp.ne.s32.totalorder %s80, %s81
      %p90 = scmp.eq.s32.totalorder %s28, 0
      %p91 = por %p89, %p90
      %p92 = scmp.ne.s32.totalorder %s80, %s81
      %p93 = scmp.eq.s32.totalorder %s29, 1
      %p94 = por %p92, %p93
      %p96 = scmp.ne.s32.totalorder %s81, %s95
      %p97 = scmp.eq.s32.totalorder %s29, 0
      %p98 = por %p96, %p97
      %s100 = sadd.s32 %s99, 1
      %p103 = scmp.eq.s32.totalorder %s23, 1
      %p104 = scmp.ne.s32.totalorder %s99, %s101
      %p105 = scmp.eq.s32.totalorder %s23, 0
      %p106 = por %p104, %p105
      %p107 = scmp.ne.s32.totalorder %s99, %s101
      %p108 = scmp.eq.s32.totalorder %s28, 1
      %p109 = por %p107, %p108
      %p110 = scmp.ne.s32.totalorder %s101, %s102
      %p111 = scmp.eq.s32.totalorder %s28, 0
      %p112 = por %p110, %p111
      %p113 = scmp.ne.s32.totalorder %s101, %s102
      %p114 = scmp.eq.s32.totalorder %s29, 1
      %p115 = por %p113, %p114
      %p117 = scmp.ne.s32.totalorder %s102, %s116
      %p118 = scmp.eq.s32.totalorder %s29, 0
      %p119 = por %p117, %p118
      %s121 = sadd.s32 %s120, 1
      %p124 = scmp.eq.s32.totalorder %s23, 1
      %p125 = scmp.ne.s32.totalorder %s120, %s122
      %p126 = scmp.eq.s32.totalorder %s23, 0
      %p127 = por %p125, %p126
      %p128 = scmp.ne.s32.totalorder %s120, %s122
      %p129 = scmp.eq.s32.totalorder %s28, 1
      %p130 = por %p128, %p129
      %p131 = scmp.ne.s32.totalorder %s122, %s123
      %p132 = scmp.eq.s32.totalorder %s28, 0
      %p133 = por %p131, %p132
      %p134 = scmp.ne.s32.totalorder %s122, %s123
      %p135 = scmp.eq.s32.totalorder %s29, 1
      %p136 = por %p134, %p135
      %p138 = scmp.ne.s32.totalorder %s123, %s137
      %p139 = scmp.eq.s32.totalorder %s29, 0
      %p140 = por %p138, %p139
      %s141 = ssub.s32 %s23, %s30
      %p142 = scmp.eq.s32.totalorder %s141, 0
      %s144 = sadd.s32 %s143, 1
      %s145 = scalar_select %p142, %s143, %s144
      %p148 = pneg %p142
      %p149 = scmp.eq.s32.totalorder %s23, 1
      %p150 = por %p148, %p149
      %p151 = scmp.ne.s32.totalorder %s143, %s146
      %p152 = scmp.eq.s32.totalorder %s23, 0
      %p153 = por %p151, %p152
      %p154 = scmp.ne.s32.totalorder %s143, %s146
      %p155 = scmp.eq.s32.totalorder %s28, 1
      %p156 = por %p154, %p155
      %p157 = scmp.ne.s32.totalorder %s146, %s147
      %p158 = scmp.eq.s32.totalorder %s28, 0
      %p159 = por %p157, %p158
      %p160 = scmp.ne.s32.totalorder %s146, %s147
      %p161 = scmp.eq.s32.totalorder %s29, 1
      %p162 = por %p160, %p161
      %p164 = scmp.ne.s32.totalorder %s147, %s163
      %p165 = scmp.eq.s32.totalorder %s29, 0
      %p166 = por %p164, %p165
      %s167 = ssub.s32 %s23, %s30
      %p168 = scmp.eq.s32.totalorder %s167, 0
      %s170 = sadd.s32 %s169, 1
      %s171 = scalar_select %p168, %s169, %s170
      %p174 = pneg %p168
      %p175 = scmp.eq.s32.totalorder %s23, 1
      %p176 = por %p174, %p175
      %p177 = scmp.ne.s32.totalorder %s169, %s172
      %p178 = scmp.eq.s32.totalorder %s23, 0
      %p179 = por %p177, %p178
      %p180 = scmp.ne.s32.totalorder %s169, %s172
      %p181 = scmp.eq.s32.totalorder %s28, 1
      %p182 = por %p180, %p181
      %p183 = scmp.ne.s32.totalorder %s172, %s173
      %p184 = scmp.eq.s32.totalorder %s28, 0
      %p185 = por %p183, %p184
      %p186 = scmp.ne.s32.totalorder %s172, %s173
      %p187 = scmp.eq.s32.totalorder %s29, 1
      %p188 = por %p186, %p187
      %p190 = scmp.ne.s32.totalorder %s173, %s189
      %p191 = scmp.eq.s32.totalorder %s29, 0
      %p192 = por %p190, %p191
      %p193 = scmp.le.s32.totalorder 1, %s23
      %p194 = scmp.lt.s32.totalorder %s23, 3
      %p195 = pnand %p193, %p194
      %p196 = pneg %p195
      // Predicated region
      $region9: #{tpu_custom_call.1} parent=5 // pred_check
        _
      $region10: #{tpu_custom_call.1} parent=5 // pred_check_branch
        %198 = sbr.rel (%p195) target = $region12
      $region11: #{tpu_custom_call.1} parent=5 // pred_region
        %s199 = ssub.s32 %s23, 1
        // Predicated region
        $region13: #{tpu_custom_call.1} parent=11 // pred_check
          %p200 = pneg %p70
        $region14: #{tpu_custom_call.1} parent=11 // pred_check_branch
          %202 = sbr.rel (%p200) target = $region16
        $region15: #{tpu_custom_call.1} parent=11 // pred_region
          %s204 = ssub.s32 1536, 1536
          %205 = vsyncadd [#allocation8], %s204
          %s206 = sshll.u32 [#allocation7], 4
          %s207 = int_to_ptr.vmem [resolvable:$true] %s206
          %212 = dma.hbm_to_vmem [thread:$0]  %s1, 1536, %s207, [#allocation8], 64, 64, 4
        $region16: #{tpu_custom_call.1} parent=11 // pred_fallthru
          _
        // Predicated region
        $region17: #{tpu_custom_call.1} parent=11 // pred_check
          %p213 = pneg %p91
        $region18: #{tpu_custom_call.1} parent=11 // pred_check_branch
          %215 = sbr.rel (%p213) target = $region20
        $region19: #{tpu_custom_call.1} parent=11 // pred_region
          _
        $region20: #{tpu_custom_call.1} parent=11 // pred_fallthru
          _
        // Predicated region
        $region21: #{tpu_custom_call.1} parent=11 // pred_check
          %p216 = pneg %p112
        $region22: #{tpu_custom_call.1} parent=11 // pred_check_branch
          %218 = sbr.rel (%p216) target = $region24
        $region23: #{tpu_custom_call.1} parent=11 // pred_region
          %s220 = ssub.s32 6144, 6144
          %221 = vsyncadd [#allocation8], %s220
          %s222 = sshll.u32 [#allocation9], 4
          %s223 = int_to_ptr.vmem [resolvable:$true] %s222
          %228 = dma.hbm_to_vmem [thread:$0]  %s3, 6144, %s223, [#allocation8], 128, 128, 8
        $region24: #{tpu_custom_call.1} parent=11 // pred_fallthru
          _
        // Predicated region
        $region25: #{tpu_custom_call.1} parent=11 // pred_check
          %p229 = pneg %p133
        $region26: #{tpu_custom_call.1} parent=11 // pred_check_branch
          %231 = sbr.rel (%p229) target = $region28
        $region27: #{tpu_custom_call.1} parent=11 // pred_region
          _
        $region28: #{tpu_custom_call.1} parent=11 // pred_fallthru
          _
      $region12: #{tpu_custom_call.1} parent=5 // pred_fallthru
        _
      %p232 = scmp.lt.s32.totalorder %s23, 2
      // Predicated region
      $region29: #{tpu_custom_call.1} parent=5 // pred_check
        %p233 = pneg %p232
      $region30: #{tpu_custom_call.1} parent=5 // pred_check_branch
        %235 = sbr.rel (%p233) target = $region32
      $region31: #{tpu_custom_call.1} parent=5 // pred_region
        // Predicated region
        $region33: #{tpu_custom_call.1} parent=31 // pred_check
          %p236 = pneg %p43
        $region34: #{tpu_custom_call.1} parent=31 // pred_check_branch
          %238 = sbr.rel (%p236) target = $region36
        $region35: #{tpu_custom_call.1} parent=31 // pred_region
          %s239 = sand.u32 %s33, 1
          %s240 = scalar_lea.sflag [#allocation5], %s239
          %s241 = sand.u32 %s33, 1
          %s242 = smul.addr %s241, 16
          %s243 = scalar_lea.vmem [#allocation4], %s242
          %s245 = ssub.s32 256, 256
          %246 = vsyncadd %s240, %s245
          %s247 = smul.addr %s23, 2
          %s248 = smul.addr %s247, 128
          %s249 = scalar_lea.hbm %s0, %s248
          %s250 = sshll.u32 %s243, 4
          %s251 = int_to_ptr.vmem [resolvable:$true] %s250
          %256 = dma.hbm_to_vmem [thread:$0]  %s249, 256, %s251, %s240, 128, 128, 8
        $region36: #{tpu_custom_call.1} parent=31 // pred_fallthru
          _
      $region32: #{tpu_custom_call.1} parent=5 // pred_fallthru
        _
      %p257 = scmp.le.s32.totalorder 1, %s23
      %p258 = scmp.lt.s32.totalorder %s23, 3
      %p259 = pnand %p257, %p258
      %p260 = pneg %p259
      // Predicated region
      $region37: #{tpu_custom_call.1} parent=5 // pred_check
        _
      $region38: #{tpu_custom_call.1} parent=5 // pred_check_branch
        %262 = sbr.rel (%p259) target = $region40
      $region39: #{tpu_custom_call.1} parent=5 // pred_region
        %s263 = ssub.s32 %s23, 1
        %s264 = sand.u32 %s36, 1
        %s265 = scalar_lea.sflag [#allocation5], %s264
        %s266 = sand.u32 %s36, 1
        %s267 = smul.addr %s266, 16
        %s268 = scalar_lea.vmem [#allocation4], %s267
        // Predicated region
        $region41: #{tpu_custom_call.1} parent=39 // pred_check
          %p269 = pneg %p49
        $region42: #{tpu_custom_call.1} parent=39 // pred_check_branch
          %271 = sbr.rel (%p269) target = $region44
        $region43: #{tpu_custom_call.1} parent=39 // pred_region
          %272 = dma.done %s265, 256
        $region44: #{tpu_custom_call.1} parent=39 // pred_fallthru
          _
        // Predicated region
        $region45: #{tpu_custom_call.1} parent=39 // pred_check
          %p273 = pneg %p70
        $region46: #{tpu_custom_call.1} parent=39 // pred_check_branch
          %275 = sbr.rel (%p273) target = $region48
        $region47: #{tpu_custom_call.1} parent=39 // pred_region
          %276 = dma.done [#allocation8], 1536
        $region48: #{tpu_custom_call.1} parent=39 // pred_fallthru
          _
        // Predicated region
        $region49: #{tpu_custom_call.1} parent=39 // pred_check
          %p277 = pneg %p112
        $region50: #{tpu_custom_call.1} parent=39 // pred_check_branch
          %279 = sbr.rel (%p277) target = $region52
        $region51: #{tpu_custom_call.1} parent=39 // pred_region
          %280 = dma.done [#allocation8], 6144
        $region52: #{tpu_custom_call.1} parent=39 // pred_fallthru
          _
        %s281 = sand.u32 %s36, 1
        %s282 = scalar_lea.sflag [#allocation5], %s281
        %s283 = sand.u32 %s36, 1
        %s284 = smul.addr %s283, 16
        %s285 = scalar_lea.vmem [#allocation4], %s284
        %p286 = pneg %p49
        %p287 = pneg %p46
        %p288 = pneg %p70
        %p289 = pneg %p67
        %p290 = pneg %p91
        %p291 = pneg %p88
        %p292 = pneg %p112
        %p293 = pneg %p109
        %p294 = pneg %p133
        %p295 = pneg %p130
        %p296 = pneg %p159
        %p297 = pneg %p156
        %s298 = sand.u32 %s146, 1
        %s299 = scalar_lea.sflag [#allocation6], %s298
        %s300 = sand.u32 %s146, 1
        %s301 = smul.addr %s300, 16
        %s302 = scalar_lea.vmem [#allocation10], %s301
        %p303 = pneg %p185
        %p304 = pneg %p182
        %s305 = sand.u32 %s172, 1
        %s306 = scalar_lea.sflag [#allocation12], %s305
        %s307 = sand.u32 %s172, 1
        %s308 = smul.addr %s307, 32
        %s309 = scalar_lea.vmem [#allocation11], %s308
        %s310 = smul.u32 2, %s28
        %s311 = smul.u32 2, %s28
        %vm313 = vcmask 516096
        %vm314 = vsmask.f32 256
        %vm315 = vmand %vm313, %vm314
        %v316 = vld [vmem:[#allocation2] sm:$0x1]
        %v317 = vsel %vm315, 0, %v316
        %318 = vst [vmem:[#allocation2] sm:$0x1] %v317
        %vm319 = vsmask.f32 7938
        %vm320 = vmand %vm313, %vm319
        %v321 = vld [vmem:[#allocation2 + $0x8] sm:$0x1]
        %v322 = vsel %vm320, 0, %v321
        %323 = vst [vmem:[#allocation2 + $0x8] sm:$0x1] %v322
        %v324 = vld [vmem:[%s268] sm:$0xff]
        %v325 = vld [vmem:[%s268 + $0x8] sm:$0xff]
        %v326 = vpack.c.bf16 %v325, %v324
        %v328 = vunpack.c.l.b16 %v326
        %v329 = vunpack.c.h.b16 %v326
        %v330 = vpack.c.b16 %v328, %v328
        %v331 = vpack.c.b16 %v329, %v329
        %vm332 = vsmask.f32 4368
        %vm333 = vmor %vm314, %vm332
        %v335 = vshrl.u32 %v330, 16
        %v337 = vrot.slane %v335, 7
        %v338 = vshll.u32 %v330, 16
        %v340 = vor.u32 %v337, %v338
        %v341 = vrot.slane %v337, 4
        %v343 = vshrl.u32 %v331, 16
        %v345 = vrot.slane %v343, 7
        %v346 = vshll.u32 %v331, 16
        %v348 = vor.u32 %v345, %v346
        %v349 = vsel %vm333, %v341, %v348
        %v350 = vrot.slane %v345, 4
        %vm354 = vcmask 519168
        %vm355 = vmand %vm354, %vm319
        %v356 = vld [vmem:[#allocation2] sm:$0xf]
        %v357 = vsel %vm355, %v340, %v356
        %358 = vst [vmem:[#allocation2] sm:$0xf] %v357
        %vm359 = vcmask 519168
        %360 = vst.msk [vmem:[#allocation2 + $0x4] sm:$0xf] %vm359, %v349
        %v361 = vld [vmem:[#allocation2 + $0x8] sm:$0x1]
        %v362 = vsel %vm315, %v350, %v361
        %363 = vst [vmem:[#allocation2 + $0x8] sm:$0x1] %v362
        %v364 = vld [vmem:[#allocation2] sm:$0xf]
        %v365 = vld [vmem:[#allocation2 + $0x4] sm:$0xf]
        %v366 = vld [vmem:[#allocation7] sm:$0xf]
        %v367 = vld [vmem:[#allocation7 + $0x4] sm:$0xf]
        %v368 = vld [vmem:[#allocation7 + $0x8] sm:$0xf]
        %v369 = vld [vmem:[#allocation7 + $0xc] sm:$0xf]
        %v370 = vld [vmem:[#allocation7 + $0x10] sm:$0xf]
        %v371 = vld [vmem:[#allocation7 + $0x14] sm:$0xf]
        %v372 = vld [vmem:[#allocation7 + $0x18] sm:$0xf]
        %v373 = vld [vmem:[#allocation7 + $0x1c] sm:$0xf]
        %v374 = vld [vmem:[#allocation2 + $0x8] sm:$0x1]
        %s375 = scalar_lea.vmem [#allocation7], 32
        %v376 = vld [vmem:[%s375] sm:$0xf]
        %v377 = vld [vmem:[%s375 + $0x4] sm:$0xf]
        %v378 = vld [vmem:[%s375 + $0x8] sm:$0xf]
        %v379 = vld [vmem:[%s375 + $0xc] sm:$0xf]
        %v380 = vld [vmem:[%s375 + $0x10] sm:$0xf]
        %v381 = vld [vmem:[%s375 + $0x14] sm:$0xf]
        %v382 = vld [vmem:[%s375 + $0x18] sm:$0xf]
        %v383 = vld [vmem:[%s375 + $0x1c] sm:$0xf]
        %v387 = vunpack.c.l.b16 %v364
        %v388 = vunpack.c.l.b16 %v365
        %v389 = vunpack.c.l.b16 %v374
        %v390 = vpack.c.b16 %v388, %v387
        %v391 = vpack.c.b16 %v389, %v389
        %vm392 = vsmask.f32 7424
        %v394 = vshrl.u32 %v390, 16
        %v396 = vshll.u32 %v390, 16
        %v398 = vrot.slane %v396, 1
        %v399 = vor.u32 %v394, %v398
        %v401 = vshll.u32 %v391, 16
        %v403 = vrot.slane %v401, 1
        %v404 = vsel %vm392, %v399, %v403
        %v413 = vunpack.c.l.b16 %v376
        %v414 = vunpack.c.l.b16 %v377
        %v415 = vunpack.c.l.b16 %v378
        %v416 = vunpack.c.l.b16 %v379
        %v417 = vunpack.c.l.b16 %v380
        %v418 = vunpack.c.l.b16 %v381
        %v419 = vunpack.c.l.b16 %v382
        %v420 = vunpack.c.l.b16 %v383
        %v421 = vpack.c.b16 %v414, %v413
        %v422 = vpack.c.b16 %v416, %v415
        %v423 = vpack.c.b16 %v418, %v417
        %v424 = vpack.c.b16 %v420, %v419
        %vm429 = vcmask 523264
        %v431 = vsel %vm429, %v404, 0
        %433 = vmatprep.subr.bf16.mxu0 0
        %434 = vmatpush1.bf16.msra.mxu0 %v421
        %435 = vmatprep.subr.bf16.mxu0 0
        %436 = vmatpush1.bf16.msra.mxu0 %v422
        %437 = vmatprep.subr.bf16.mxu0 0
        %438 = vmatpush1.bf16.msra.mxu0 %v423
        %439 = vmatprep.subr.bf16.mxu0 0
        %440 = vmatpush1.bf16.msra.mxu0 %v424
        %441 = vmatprep.subr.bf16.mxu0 0
        %442 = vmatpush1.bf16.msra.mxu0 0
        %443 = vmatprep.subr.bf16.mxu0 0
        %444 = vmatpush1.bf16.msra.mxu0 0
        %445 = vmatprep.subr.bf16.mxu0 0
        %446 = vmatpush1.bf16.msra.mxu0 0
        %447 = vmatprep.subr.bf16.mxu0 0
        %448 = vmatpush1.bf16.msra.mxu0 0
        %449 = vmatprep.subr.bf16.mxu0 0
        %450 = vmatpush1.bf16.msra.mxu0 0
        %451 = vmatprep.subr.bf16.mxu0 0
        %452 = vmatpush1.bf16.msra.mxu0 0
        %453 = vmatprep.subr.bf16.mxu0 0
        %454 = vmatpush1.bf16.msra.mxu0 0
        %455 = vmatprep.subr.bf16.mxu0 0
        %456 = vmatpush1.bf16.msra.mxu0 0
        %457 = vmatprep.subr.bf16.mxu0 0
        %458 = vmatpush1.bf16.msra.mxu0 0
        %459 = vmatprep.subr.bf16.mxu0 0
        %460 = vmatpush1.bf16.msra.mxu0 0
        %461 = vmatprep.subr.bf16.mxu0 0
        %462 = vmatpush1.bf16.msra.mxu0 0
        %463 = vmatprep.subr.bf16.mxu0 0
        %464 = vmatpush1.bf16.msra.mxu0 0
        %465 = vmatprep.mubr.bf16.mxu0 0
        %466 = vmatmul.mubr.bf16.gmra.mrb[0].mxu0 %v431
        %v467 = vpop.f32.mrb[0].mxu0
        %v468 = vadd.f32 0.0, %v467
        %v469 = vpop.f32.mrb[0].mxu0
        %v470 = vpop.f32.mrb[0].mxu0
        %v471 = vadd.f32 0.0, %v470
        %v472 = vpop.f32.mrb[0].mxu0
        %473 = vdwg.mxu0
        %v482 = vunpack.c.l.b16 %v366
        %v483 = vunpack.c.l.b16 %v367
        %v484 = vunpack.c.l.b16 %v368
        %v485 = vunpack.c.l.b16 %v369
        %v486 = vunpack.c.l.b16 %v370
        %v487 = vunpack.c.l.b16 %v371
        %v488 = vunpack.c.l.b16 %v372
        %v489 = vunpack.c.l.b16 %v373
        %v490 = vpack.c.b16 %v483, %v482
        %v491 = vpack.c.b16 %v485, %v484
        %v492 = vpack.c.b16 %v487, %v486
        %v493 = vpack.c.b16 %v489, %v488
        %v498 = vsel %vm429, %v390, 0
        %500 = vmatprep.subr.bf16.mxu0 0
        %501 = vmatpush1.bf16.msra.mxu0 %v490
        %502 = vmatprep.subr.bf16.mxu0 0
        %503 = vmatpush1.bf16.msra.mxu0 %v491
        %504 = vmatprep.subr.bf16.mxu0 0
        %505 = vmatpush1.bf16.msra.mxu0 %v492
        %506 = vmatprep.subr.bf16.mxu0 0
        %507 = vmatpush1.bf16.msra.mxu0 %v493
        %508 = vmatprep.subr.bf16.mxu0 0
        %509 = vmatpush1.bf16.msra.mxu0 0
        %510 = vmatprep.subr.bf16.mxu0 0
        %511 = vmatpush1.bf16.msra.mxu0 0
        %512 = vmatprep.subr.bf16.mxu0 0
        %513 = vmatpush1.bf16.msra.mxu0 0
        %514 = vmatprep.subr.bf16.mxu0 0
        %515 = vmatpush1.bf16.msra.mxu0 0
        %516 = vmatprep.subr.bf16.mxu0 0
        %517 = vmatpush1.bf16.msra.mxu0 0
        %518 = vmatprep.subr.bf16.mxu0 0
        %519 = vmatpush1.bf16.msra.mxu0 0
        %520 = vmatprep.subr.bf16.mxu0 0
        %521 = vmatpush1.bf16.msra.mxu0 0
        %522 = vmatprep.subr.bf16.mxu0 0
        %523 = vmatpush1.bf16.msra.mxu0 0
        %524 = vmatprep.subr.bf16.mxu0 0
        %525 = vmatpush1.bf16.msra.mxu0 0
        %526 = vmatprep.subr.bf16.mxu0 0
        %527 = vmatpush1.bf16.msra.mxu0 0
        %528 = vmatprep.subr.bf16.mxu0 0
        %529 = vmatpush1.bf16.msra.mxu0 0
        %530 = vmatprep.subr.bf16.mxu0 0
        %531 = vmatpush1.bf16.msra.mxu0 0
        %532 = vmatprep.mubr.bf16.mxu0 0
        %533 = vmatmul.mubr.bf16.gmra.mrb[0].mxu0 %v498
        %v534 = vpop.f32.mrb[0].mxu0
        %v535 = vadd.f32 %v468, %v534
        %v536 = vpop.f32.mrb[0].mxu0
        %v537 = vpop.f32.mrb[0].mxu0
        %v538 = vadd.f32 %v471, %v537
        %v539 = vpop.f32.mrb[0].mxu0
        %540 = vdwg.mxu0
        %v541 = vld [vmem:[#allocation2] sm:$0xe]
        %s542 = scalar_lea.vmem [#allocation7], 64
        %v543 = vld [vmem:[%s542] sm:$0xf]
        %v544 = vld [vmem:[%s542 + $0x4] sm:$0xf]
        %v545 = vld [vmem:[%s542 + $0x8] sm:$0xf]
        %v546 = vld [vmem:[%s542 + $0xc] sm:$0xf]
        %v547 = vld [vmem:[%s542 + $0x10] sm:$0xf]
        %v548 = vld [vmem:[%s542 + $0x14] sm:$0xf]
        %v549 = vld [vmem:[%s542 + $0x18] sm:$0xf]
        %v550 = vld [vmem:[%s542 + $0x1c] sm:$0xf]
        %v552 = vunpack.c.l.b16 %v541
        %v553 = vpack.c.b16 %v388, %v552
        %vm554 = vcmask 1046528
        %v555 = vrot.slane %v553, 1
        %v556 = vrot.slane %v391, 1
        %v557 = vsel %vm554, %v555, %v556
        %v566 = vunpack.c.l.b16 %v543
        %v567 = vunpack.c.l.b16 %v544
        %v568 = vunpack.c.l.b16 %v545
        %v569 = vunpack.c.l.b16 %v546
        %v570 = vunpack.c.l.b16 %v547
        %v571 = vunpack.c.l.b16 %v548
        %v572 = vunpack.c.l.b16 %v549
        %v573 = vunpack.c.l.b16 %v550
        %v574 = vpack.c.b16 %v567, %v566
        %v575 = vpack.c.b16 %v569, %v568
        %v576 = vpack.c.b16 %v571, %v570
        %v577 = vpack.c.b16 %v573, %v572
        %v583 = vsel %vm429, %v557, 0
        %585 = vmatprep.subr.bf16.mxu0 0
        %586 = vmatpush1.bf16.msra.mxu0 %v574
        %587 = vmatprep.subr.bf16.mxu0 0
        %588 = vmatpush1.bf16.msra.mxu0 %v575
        %589 = vmatprep.subr.bf16.mxu0 0
        %590 = vmatpush1.bf16.msra.mxu0 %v576
        %591 = vmatprep.subr.bf16.mxu0 0
        %592 = vmatpush1.bf16.msra.mxu0 %v577
        %593 = vmatprep.subr.bf16.mxu0 0
        %594 = vmatpush1.bf16.msra.mxu0 0
        %595 = vmatprep.subr.bf16.mxu0 0
        %596 = vmatpush1.bf16.msra.mxu0 0
        %597 = vmatprep.subr.bf16.mxu0 0
        %598 = vmatpush1.bf16.msra.mxu0 0
        %599 = vmatprep.subr.bf16.mxu0 0
        %600 = vmatpush1.bf16.msra.mxu0 0
        %601 = vmatprep.subr.bf16.mxu0 0
        %602 = vmatpush1.bf16.msra.mxu0 0
        %603 = vmatprep.subr.bf16.mxu0 0
        %604 = vmatpush1.bf16.msra.mxu0 0
        %605 = vmatprep.subr.bf16.mxu0 0
        %606 = vmatpush1.bf16.msra.mxu0 0
        %607 = vmatprep.subr.bf16.mxu0 0
        %608 = vmatpush1.bf16.msra.mxu0 0
        %609 = vmatprep.subr.bf16.mxu0 0
        %610 = vmatpush1.bf16.msra.mxu0 0
        %611 = vmatprep.subr.bf16.mxu0 0
        %612 = vmatpush1.bf16.msra.mxu0 0
        %613 = vmatprep.subr.bf16.mxu0 0
        %614 = vmatpush1.bf16.msra.mxu0 0
        %615 = vmatprep.subr.bf16.mxu0 0
        %616 = vmatpush1.bf16.msra.mxu0 0
        %617 = vmatprep.mubr.bf16.mxu0 0
        %618 = vmatmul.mubr.bf16.gmra.mrb[0].mxu0 %v583
        %v619 = vpop.f32.mrb[0].mxu0
        %v620 = vadd.f32 0.0, %v619
        %v621 = vpop.f32.mrb[0].mxu0
        %v622 = vpop.f32.mrb[0].mxu0
        %v623 = vadd.f32 0.0, %v622
        %v624 = vpop.f32.mrb[0].mxu0
        %625 = vdwg.mxu0
        %v626 = vadd.f32 %v535, %v620
        %v627 = vadd.f32 %v538, %v623
        %v628 = vld [vmem:[%s2] sm:$0x1]
        %v630 = vlaneseq
        %v631 = vshrl.u32 %v630, 7
        %v632 = vsub.s32 0, %v631
        %v633 = vrot.slane %v628, %v632
        %v635 = vadd.f32 %v626, %v633
        %v636 = vadd.f32 %v627, %v633
        %637 = vst [vmem:[%s302] sm:$0xff] %v635
        %638 = vst [vmem:[%s302 + $0x8] sm:$0xff] %v636
        %vm639 = vcmask 1040384
        %vm640 = vmand %vm639, %vm314
        %v641 = vld [vmem:[#allocation3] sm:$0x1]
        %v642 = vsel %vm640, 0, %v641
        %643 = vst [vmem:[#allocation3] sm:$0x1] %v642
        %vm644 = vmand %vm639, %vm319
        %v645 = vld [vmem:[#allocation3 + $0x8] sm:$0x1]
        %v646 = vsel %vm644, 0, %v645
        %647 = vst [vmem:[#allocation3 + $0x8] sm:$0x1] %v646
        %v648 = vmax.f32 %v635, 0.0
        %v649 = vmax.f32 %v636, 0.0
        %v650 = vpack.c.bf16 %v649, %v648
        %v652 = vunpack.c.l.b16 %v650
        %v653 = vunpack.c.h.b16 %v650
        %v654 = vpack.c.b16 %v652, %v652
        %v655 = vpack.c.b16 %v653, %v653
        %v657 = vshrl.u32 %v654, 16
        %v659 = vrot.slane %v657, 7
        %v660 = vshll.u32 %v654, 16
        %v662 = vor.u32 %v659, %v660
        %v663 = vrot.slane %v659, 4
        %v665 = vshrl.u32 %v655, 16
        %v667 = vrot.slane %v665, 7
        %v668 = vshll.u32 %v655, 16
        %v670 = vor.u32 %v667, %v668
        %v671 = vsel %vm333, %v663, %v670
        %v672 = vrot.slane %v667, 4
        %vm676 = vcmask 1043456
        %vm677 = vmand %vm676, %vm319
        %v678 = vld [vmem:[#allocation3] sm:$0xf]
        %v679 = vsel %vm677, %v662, %v678
        %680 = vst [vmem:[#allocation3] sm:$0xf] %v679
        %681 = vst [vmem:[#allocation3 + $0x4] sm:$0xf] %v671
        %v682 = vld [vmem:[#allocation3 + $0x8] sm:$0x1]
        %v683 = vsel %vm640, %v672, %v682
        %684 = vst [vmem:[#allocation3 + $0x8] sm:$0x1] %v683
        %v685 = vld [vmem:[#allocation3] sm:$0xf]
        %v686 = vld [vmem:[#allocation3 + $0x4] sm:$0xf]
        %v687 = vld [vmem:[#allocation9] sm:$0xff]
        %v688 = vld [vmem:[#allocation9 + $0x8] sm:$0xff]
        %v689 = vld [vmem:[#allocation9 + $0x10] sm:$0xff]
        %v690 = vld [vmem:[#allocation9 + $0x18] sm:$0xff]
        %v691 = vld [vmem:[#allocation9 + $0x20] sm:$0xff]
        %v692 = vld [vmem:[#allocation9 + $0x28] sm:$0xff]
        %v693 = vld [vmem:[#allocation9 + $0x30] sm:$0xff]
        %v694 = vld [vmem:[#allocation9 + $0x38] sm:$0xff]
        %v695 = vld [vmem:[#allocation9 + $0x40] sm:$0xff]
        %v696 = vld [vmem:[#allocation9 + $0x48] sm:$0xff]
        %v697 = vld [vmem:[#allocation9 + $0x50] sm:$0xff]
        %v698 = vld [vmem:[#allocation9 + $0x58] sm:$0xff]
        %v699 = vld [vmem:[#allocation9 + $0x60] sm:$0xff]
        %v700 = vld [vmem:[#allocation9 + $0x68] sm:$0xff]
        %v701 = vld [vmem:[#allocation9 + $0x70] sm:$0xff]
        %v702 = vld [vmem:[#allocation9 + $0x78] sm:$0xff]
        %v703 = vld [vmem:[#allocation3 + $0x8] sm:$0x1]
        %s704 = scalar_lea.vmem [#allocation9], 128
        %v705 = vld [vmem:[%s704] sm:$0xff]
        %v706 = vld [vmem:[%s704 + $0x8] sm:$0xff]
        %v707 = vld [vmem:[%s704 + $0x10] sm:$0xff]
        %v708 = vld [vmem:[%s704 + $0x18] sm:$0xff]
        %v709 = vld [vmem:[%s704 + $0x20] sm:$0xff]
        %v710 = vld [vmem:[%s704 + $0x28] sm:$0xff]
        %v711 = vld [vmem:[%s704 + $0x30] sm:$0xff]
        %v712 = vld [vmem:[%s704 + $0x38] sm:$0xff]
        %v713 = vld [vmem:[%s704 + $0x40] sm:$0xff]
        %v714 = vld [vmem:[%s704 + $0x48] sm:$0xff]
        %v715 = vld [vmem:[%s704 + $0x50] sm:$0xff]
        %v716 = vld [vmem:[%s704 + $0x58] sm:$0xff]
        %v717 = vld [vmem:[%s704 + $0x60] sm:$0xff]
        %v718 = vld [vmem:[%s704 + $0x68] sm:$0xff]
        %v719 = vld [vmem:[%s704 + $0x70] sm:$0xff]
        %v720 = vld [vmem:[%s704 + $0x78] sm:$0xff]
        %v724 = vunpack.c.l.b16 %v685
        %v725 = vunpack.c.l.b16 %v686
        %v726 = vunpack.c.l.b16 %v703
        %v727 = vpack.c.b16 %v725, %v724
        %v728 = vpack.c.b16 %v726, %v726
        %v730 = vshrl.u32 %v727, 16
        %v732 = vshll.u32 %v727, 16
        %v734 = vrot.slane %v732, 1
        %v735 = vor.u32 %v730, %v734
        %v737 = vshll.u32 %v728, 16
        %v739 = vrot.slane %v737, 1
        %v740 = vsel %vm392, %v735, %v739
        %v758 = vunpack.c.l.b16 %v705
        %v759 = vunpack.c.h.b16 %v705
        %v760 = vunpack.c.l.b16 %v706
        %v761 = vunpack.c.h.b16 %v706
        %v762 = vunpack.c.l.b16 %v707
        %v763 = vunpack.c.h.b16 %v707
        %v764 = vunpack.c.l.b16 %v708
        %v765 = vunpack.c.h.b16 %v708
        %v766 = vunpack.c.l.b16 %v709
        %v767 = vunpack.c.h.b16 %v709
        %v768 = vunpack.c.l.b16 %v710
        %v769 = vunpack.c.h.b16 %v710
        %v770 = vunpack.c.l.b16 %v711
        %v771 = vunpack.c.h.b16 %v711
        %v772 = vunpack.c.l.b16 %v712
        %v773 = vunpack.c.h.b16 %v712
        %v774 = vunpack.c.l.b16 %v713
        %v775 = vunpack.c.h.b16 %v713
        %v776 = vunpack.c.l.b16 %v714
        %v777 = vunpack.c.h.b16 %v714
        %v778 = vunpack.c.l.b16 %v715
        %v779 = vunpack.c.h.b16 %v715
        %v780 = vunpack.c.l.b16 %v716
        %v781 = vunpack.c.h.b16 %v716
        %v782 = vunpack.c.l.b16 %v717
        %v783 = vunpack.c.h.b16 %v717
        %v784 = vunpack.c.l.b16 %v718
        %v785 = vunpack.c.h.b16 %v718
        %v786 = vunpack.c.l.b16 %v719
        %v787 = vunpack.c.h.b16 %v719
        %v788 = vunpack.c.l.b16 %v720
        %v789 = vunpack.c.h.b16 %v720
        %v790 = vpack.c.b16 %v760, %v758
        %v791 = vpack.c.b16 %v761, %v759
        %v792 = vpack.c.b16 %v764, %v762
        %v793 = vpack.c.b16 %v765, %v763
        %v794 = vpack.c.b16 %v768, %v766
        %v795 = vpack.c.b16 %v769, %v767
        %v796 = vpack.c.b16 %v772, %v770
        %v797 = vpack.c.b16 %v773, %v771
        %v798 = vpack.c.b16 %v776, %v774
        %v799 = vpack.c.b16 %v777, %v775
        %v800 = vpack.c.b16 %v780, %v778
        %v801 = vpack.c.b16 %v781, %v779
        %v802 = vpack.c.b16 %v784, %v782
        %v803 = vpack.c.b16 %v785, %v783
        %v804 = vpack.c.b16 %v788, %v786
        %v805 = vpack.c.b16 %v789, %v787
        %822 = vmatprep.subr.bf16.mxu0 %v791
        %823 = vmatpush1.bf16.msra.mxu0 %v790
        %824 = vmatprep.subr.bf16.mxu0 %v793
        %825 = vmatpush1.bf16.msra.mxu0 %v792
        %826 = vmatprep.subr.bf16.mxu0 %v795
        %827 = vmatpush1.bf16.msra.mxu0 %v794
        %828 = vmatprep.subr.bf16.mxu0 %v797
        %829 = vmatpush1.bf16.msra.mxu0 %v796
        %830 = vmatprep.subr.bf16.mxu0 %v799
        %831 = vmatpush1.bf16.msra.mxu0 %v798
        %832 = vmatprep.subr.bf16.mxu0 %v801
        %833 = vmatpush1.bf16.msra.mxu0 %v800
        %834 = vmatprep.subr.bf16.mxu0 %v803
        %835 = vmatpush1.bf16.msra.mxu0 %v802
        %836 = vmatprep.subr.bf16.mxu0 %v805
        %837 = vmatpush1.bf16.msra.mxu0 %v804
        %838 = vmatprep.subr.bf16.mxu0 0
        %839 = vmatpush1.bf16.msra.mxu0 0
        %840 = vmatprep.subr.bf16.mxu0 0
        %841 = vmatpush1.bf16.msra.mxu0 0
        %842 = vmatprep.subr.bf16.mxu0 0
        %843 = vmatpush1.bf16.msra.mxu0 0
        %844 = vmatprep.subr.bf16.mxu0 0
        %845 = vmatpush1.bf16.msra.mxu0 0
        %846 = vmatprep.subr.bf16.mxu0 0
        %847 = vmatpush1.bf16.msra.mxu0 0
        %848 = vmatprep.subr.bf16.mxu0 0
        %849 = vmatpush1.bf16.msra.mxu0 0
        %850 = vmatprep.subr.bf16.mxu0 0
        %851 = vmatpush1.bf16.msra.mxu0 0
        %852 = vmatprep.subr.bf16.mxu0 0
        %853 = vmatpush1.bf16.msra.mxu0 0
        %854 = vmatprep.mubr.bf16.mxu0 0
        %855 = vmatmul.mubr.bf16.gmra.mrb[0].mxu0 %v740
        %v856 = vpop.f32.mrb[0].mxu0
        %v857 = vadd.f32 0.0, %v856
        %v858 = vpop.f32.mrb[0].mxu0
        %v859 = vadd.f32 0.0, %v858
        %v860 = vpop.f32.mrb[0].mxu0
        %v861 = vadd.f32 0.0, %v860
        %v862 = vpop.f32.mrb[0].mxu0
        %v863 = vadd.f32 0.0, %v862
        %864 = vdwg.mxu0
        %v882 = vunpack.c.l.b16 %v687
        %v883 = vunpack.c.h.b16 %v687
        %v884 = vunpack.c.l.b16 %v688
        %v885 = vunpack.c.h.b16 %v688
        %v886 = vunpack.c.l.b16 %v689
        %v887 = vunpack.c.h.b16 %v689
        %v888 = vunpack.c.l.b16 %v690
        %v889 = vunpack.c.h.b16 %v690
        %v890 = vunpack.c.l.b16 %v691
        %v891 = vunpack.c.h.b16 %v691
        %v892 = vunpack.c.l.b16 %v692
        %v893 = vunpack.c.h.b16 %v692
        %v894 = vunpack.c.l.b16 %v693
        %v895 = vunpack.c.h.b16 %v693
        %v896 = vunpack.c.l.b16 %v694
        %v897 = vunpack.c.h.b16 %v694
        %v898 = vunpack.c.l.b16 %v695
        %v899 = vunpack.c.h.b16 %v695
        %v900 = vunpack.c.l.b16 %v696
        %v901 = vunpack.c.h.b16 %v696
        %v902 = vunpack.c.l.b16 %v697
        %v903 = vunpack.c.h.b16 %v697
        %v904 = vunpack.c.l.b16 %v698
        %v905 = vunpack.c.h.b16 %v698
        %v906 = vunpack.c.l.b16 %v699
        %v907 = vunpack.c.h.b16 %v699
        %v908 = vunpack.c.l.b16 %v700
        %v909 = vunpack.c.h.b16 %v700
        %v910 = vunpack.c.l.b16 %v701
        %v911 = vunpack.c.h.b16 %v701
        %v912 = vunpack.c.l.b16 %v702
        %v913 = vunpack.c.h.b16 %v702
        %v914 = vpack.c.b16 %v884, %v882
        %v915 = vpack.c.b16 %v885, %v883
        %v916 = vpack.c.b16 %v888, %v886
        %v917 = vpack.c.b16 %v889, %v887
        %v918 = vpack.c.b16 %v892, %v890
        %v919 = vpack.c.b16 %v893, %v891
        %v920 = vpack.c.b16 %v896, %v894
        %v921 = vpack.c.b16 %v897, %v895
        %v922 = vpack.c.b16 %v900, %v898
        %v923 = vpack.c.b16 %v901, %v899
        %v924 = vpack.c.b16 %v904, %v902
        %v925 = vpack.c.b16 %v905, %v903
        %v926 = vpack.c.b16 %v908, %v906
        %v927 = vpack.c.b16 %v909, %v907
        %v928 = vpack.c.b16 %v912, %v910
        %v929 = vpack.c.b16 %v913, %v911
        %946 = vmatprep.subr.bf16.mxu0 %v915
        %947 = vmatpush1.bf16.msra.mxu0 %v914
        %948 = vmatprep.subr.bf16.mxu0 %v917
        %949 = vmatpush1.bf16.msra.mxu0 %v916
        %950 = vmatprep.subr.bf16.mxu0 %v919
        %951 = vmatpush1.bf16.msra.mxu0 %v918
        %952 = vmatprep.subr.bf16.mxu0 %v921
        %953 = vmatpush1.bf16.msra.mxu0 %v920
        %954 = vmatprep.subr.bf16.mxu0 %v923
        %955 = vmatpush1.bf16.msra.mxu0 %v922
        %956 = vmatprep.subr.bf16.mxu0 %v925
        %957 = vmatpush1.bf16.msra.mxu0 %v924
        %958 = vmatprep.subr.bf16.mxu0 %v927
        %959 = vmatpush1.bf16.msra.mxu0 %v926
        %960 = vmatprep.subr.bf16.mxu0 %v929
        %961 = vmatpush1.bf16.msra.mxu0 %v928
        %962 = vmatprep.subr.bf16.mxu0 0
        %963 = vmatpush1.bf16.msra.mxu0 0
        %964 = vmatprep.subr.bf16.mxu0 0
        %965 = vmatpush1.bf16.msra.mxu0 0
        %966 = vmatprep.subr.bf16.mxu0 0
        %967 = vmatpush1.bf16.msra.mxu0 0
        %968 = vmatprep.subr.bf16.mxu0 0
        %969 = vmatpush1.bf16.msra.mxu0 0
        %970 = vmatprep.subr.bf16.mxu0 0
        %971 = vmatpush1.bf16.msra.mxu0 0
        %972 = vmatprep.subr.bf16.mxu0 0
        %973 = vmatpush1.bf16.msra.mxu0 0
        %974 = vmatprep.subr.bf16.mxu0 0
        %975 = vmatpush1.bf16.msra.mxu0 0
        %976 = vmatprep.subr.bf16.mxu0 0
        %977 = vmatpush1.bf16.msra.mxu0 0
        %978 = vmatprep.mubr.bf16.mxu0 0
        %979 = vmatmul.mubr.bf16.gmra.mrb[0].mxu0 %v727
        %v980 = vpop.f32.mrb[0].mxu0
        %v981 = vadd.f32 %v857, %v980
        %v982 = vpop.f32.mrb[0].mxu0
        %v983 = vadd.f32 %v859, %v982
        %v984 = vpop.f32.mrb[0].mxu0
        %v985 = vadd.f32 %v861, %v984
        %v986 = vpop.f32.mrb[0].mxu0
        %v987 = vadd.f32 %v863, %v986
        %988 = vdwg.mxu0
        %v989 = vld [vmem:[#allocation3] sm:$0xe]
        %s990 = scalar_lea.vmem [#allocation9], 256
        %v991 = vld [vmem:[%s990] sm:$0xff]
        %v992 = vld [vmem:[%s990 + $0x8] sm:$0xff]
        %v993 = vld [vmem:[%s990 + $0x10] sm:$0xff]
        %v994 = vld [vmem:[%s990 + $0x18] sm:$0xff]
        %v995 = vld [vmem:[%s990 + $0x20] sm:$0xff]
        %v996 = vld [vmem:[%s990 + $0x28] sm:$0xff]
        %v997 = vld [vmem:[%s990 + $0x30] sm:$0xff]
        %v998 = vld [vmem:[%s990 + $0x38] sm:$0xff]
        %v999 = vld [vmem:[%s990 + $0x40] sm:$0xff]
        %v1000 = vld [vmem:[%s990 + $0x48] sm:$0xff]
        %v1001 = vld [vmem:[%s990 + $0x50] sm:$0xff]
        %v1002 = vld [vmem:[%s990 + $0x58] sm:$0xff]
        %v1003 = vld [vmem:[%s990 + $0x60] sm:$0xff]
        %v1004 = vld [vmem:[%s990 + $0x68] sm:$0xff]
        %v1005 = vld [vmem:[%s990 + $0x70] sm:$0xff]
        %v1006 = vld [vmem:[%s990 + $0x78] sm:$0xff]
        %v1008 = vunpack.c.l.b16 %v989
        %v1009 = vpack.c.b16 %v725, %v1008
        %v1010 = vrot.slane %v1009, 1
        %v1011 = vrot.slane %v728, 1
        %v1012 = vsel %vm554, %v1010, %v1011
        %v1030 = vunpack.c.l.b16 %v991
        %v1031 = vunpack.c.h.b16 %v991
        %v1032 = vunpack.c.l.b16 %v992
        %v1033 = vunpack.c.h.b16 %v992
        %v1034 = vunpack.c.l.b16 %v993
        %v1035 = vunpack.c.h.b16 %v993
        %v1036 = vunpack.c.l.b16 %v994
        %v1037 = vunpack.c.h.b16 %v994
        %v1038 = vunpack.c.l.b16 %v995
        %v1039 = vunpack.c.h.b16 %v995
        %v1040 = vunpack.c.l.b16 %v996
        %v1041 = vunpack.c.h.b16 %v996
        %v1042 = vunpack.c.l.b16 %v997
        %v1043 = vunpack.c.h.b16 %v997
        %v1044 = vunpack.c.l.b16 %v998
        %v1045 = vunpack.c.h.b16 %v998
        %v1046 = vunpack.c.l.b16 %v999
        %v1047 = vunpack.c.h.b16 %v999
        %v1048 = vunpack.c.l.b16 %v1000
        %v1049 = vunpack.c.h.b16 %v1000
        %v1050 = vunpack.c.l.b16 %v1001
        %v1051 = vunpack.c.h.b16 %v1001
        %v1052 = vunpack.c.l.b16 %v1002
        %v1053 = vunpack.c.h.b16 %v1002
        %v1054 = vunpack.c.l.b16 %v1003
        %v1055 = vunpack.c.h.b16 %v1003
        %v1056 = vunpack.c.l.b16 %v1004
        %v1057 = vunpack.c.h.b16 %v1004
        %v1058 = vunpack.c.l.b16 %v1005
        %v1059 = vunpack.c.h.b16 %v1005
        %v1060 = vunpack.c.l.b16 %v1006
        %v1061 = vunpack.c.h.b16 %v1006
        %v1062 = vpack.c.b16 %v1032, %v1030
        %v1063 = vpack.c.b16 %v1033, %v1031
        %v1064 = vpack.c.b16 %v1036, %v1034
        %v1065 = vpack.c.b16 %v1037, %v1035
        %v1066 = vpack.c.b16 %v1040, %v1038
        %v1067 = vpack.c.b16 %v1041, %v1039
        %v1068 = vpack.c.b16 %v1044, %v1042
        %v1069 = vpack.c.b16 %v1045, %v1043
        %v1070 = vpack.c.b16 %v1048, %v1046
        %v1071 = vpack.c.b16 %v1049, %v1047
        %v1072 = vpack.c.b16 %v1052, %v1050
        %v1073 = vpack.c.b16 %v1053, %v1051
        %v1074 = vpack.c.b16 %v1056, %v1054
        %v1075 = vpack.c.b16 %v1057, %v1055
        %v1076 = vpack.c.b16 %v1060, %v1058
        %v1077 = vpack.c.b16 %v1061, %v1059
        %1094 = vmatprep.subr.bf16.mxu0 %v1063
        %1095 = vmatpush1.bf16.msra.mxu0 %v1062
        %1096 = vmatprep.subr.bf16.mxu0 %v1065
        %1097 = vmatpush1.bf16.msra.mxu0 %v1064
        %1098 = vmatprep.subr.bf16.mxu0 %v1067
        %1099 = vmatpush1.bf16.msra.mxu0 %v1066
        %1100 = vmatprep.subr.bf16.mxu0 %v1069
        %1101 = vmatpush1.bf16.msra.mxu0 %v1068
        %1102 = vmatprep.subr.bf16.mxu0 %v1071
        %1103 = vmatpush1.bf16.msra.mxu0 %v1070
        %1104 = vmatprep.subr.bf16.mxu0 %v1073
        %1105 = vmatpush1.bf16.msra.mxu0 %v1072
        %1106 = vmatprep.subr.bf16.mxu0 %v1075
        %1107 = vmatpush1.bf16.msra.mxu0 %v1074
        %1108 = vmatprep.subr.bf16.mxu0 %v1077
        %1109 = vmatpush1.bf16.msra.mxu0 %v1076
        %1110 = vmatprep.subr.bf16.mxu0 0
        %1111 = vmatpush1.bf16.msra.mxu0 0
        %1112 = vmatprep.subr.bf16.mxu0 0
        %1113 = vmatpush1.bf16.msra.mxu0 0
        %1114 = vmatprep.subr.bf16.mxu0 0
        %1115 = vmatpush1.bf16.msra.mxu0 0
        %1116 = vmatprep.subr.bf16.mxu0 0
        %1117 = vmatpush1.bf16.msra.mxu0 0
        %1118 = vmatprep.subr.bf16.mxu0 0
        %1119 = vmatpush1.bf16.msra.mxu0 0
        %1120 = vmatprep.subr.bf16.mxu0 0
        %1121 = vmatpush1.bf16.msra.mxu0 0
        %1122 = vmatprep.subr.bf16.mxu0 0
        %1123 = vmatpush1.bf16.msra.mxu0 0
        %1124 = vmatprep.subr.bf16.mxu0 0
        %1125 = vmatpush1.bf16.msra.mxu0 0
        %1126 = vmatprep.mubr.bf16.mxu0 0
        %1127 = vmatmul.mubr.bf16.gmra.mrb[0].mxu0 %v1012
        %v1128 = vpop.f32.mrb[0].mxu0
        %v1129 = vadd.f32 0.0, %v1128
        %v1130 = vpop.f32.mrb[0].mxu0
        %v1131 = vadd.f32 0.0, %v1130
        %v1132 = vpop.f32.mrb[0].mxu0
        %v1133 = vadd.f32 0.0, %v1132
        %v1134 = vpop.f32.mrb[0].mxu0
        %v1135 = vadd.f32 0.0, %v1134
        %1136 = vdwg.mxu0
        %v1137 = vadd.f32 %v981, %v1129
        %v1138 = vadd.f32 %v983, %v1131
        %v1139 = vadd.f32 %v985, %v1133
        %v1140 = vadd.f32 %v987, %v1135
        %v1141 = vld [vmem:[%s4] sm:$0x3]
        %v1143 = vlaneseq
        %v1144 = vshrl.u32 %v1143, 7
        %v1145 = vsub.s32 0, %v1144
        %v1146 = vrot.slane %v1141, %v1145
        %v1147 = vlaneseq
        %v1148 = vshrl.u32 %v1147, 7
        %v1149 = vsub.s32 1, %v1148
        %v1150 = vrot.slane %v1141, %v1149
        %v1153 = vadd.f32 %v1137, %v1146
        %v1154 = vadd.f32 %v1138, %v1150
        %v1155 = vadd.f32 %v1139, %v1146
        %v1156 = vadd.f32 %v1140, %v1150
        %1157 = vst [vmem:[%s309] sm:$0xff] %v1153
        %1158 = vst [vmem:[%s309 + $0x8] sm:$0xff] %v1154
        %1159 = vst [vmem:[%s309 + $0x10] sm:$0xff] %v1155
        %1160 = vst [vmem:[%s309 + $0x18] sm:$0xff] %v1156
        %s1161 = sand.u32 %s146, 1
        %s1162 = scalar_lea.sflag [#allocation6], %s1161
        %s1163 = sand.u32 %s146, 1
        %s1164 = smul.addr %s1163, 16
        %s1165 = scalar_lea.vmem [#allocation10], %s1164
        %s1166 = sand.u32 %s172, 1
        %s1167 = scalar_lea.sflag [#allocation12], %s1166
        %s1168 = sand.u32 %s172, 1
        %s1169 = smul.addr %s1168, 32
        %s1170 = scalar_lea.vmem [#allocation11], %s1169
        // Predicated region
        $region53: #{tpu_custom_call.1} parent=39 // pred_check
          %p1171 = pneg %p156
        $region54: #{tpu_custom_call.1} parent=39 // pred_check_branch
          %1173 = sbr.rel (%p1171) target = $region56
        $region55: #{tpu_custom_call.1} parent=39 // pred_region
          %s1174 = smul.u32 2, %s28
          %s1176 = ssub.s32 256, 256
          %1177 = vsyncadd %s1162, %s1176
          %s1178 = smul.addr %s1174, 128
          %s1179 = scalar_lea.hbm %s5, %s1178
          %s1180 = sshll.u32 %s1165, 4
          %s1181 = int_to_ptr.vmem [resolvable:$true] %s1180
          %1186 = dma.vmem_to_hbm [thread:$0]  %s1181, 256, %s1179, %s1162, 128, 128, 8
        $region56: #{tpu_custom_call.1} parent=39 // pred_fallthru
          _
        // Predicated region
        $region57: #{tpu_custom_call.1} parent=39 // pred_check
          %p1187 = pneg %p182
        $region58: #{tpu_custom_call.1} parent=39 // pred_check_branch
          %1189 = sbr.rel (%p1187) target = $region60
        $region59: #{tpu_custom_call.1} parent=39 // pred_region
          %s1190 = smul.u32 2, %s28
          %s1192 = ssub.s32 512, 512
          %1193 = vsyncadd %s1167, %s1192
          %s1194 = smul.addr %s1190, 2
          %s1195 = smul.addr %s1194, 128
          %s1196 = scalar_lea.hbm %s6, %s1195
          %s1197 = sshll.u32 %s1170, 4
          %s1198 = int_to_ptr.vmem [resolvable:$true] %s1197
          %1203 = dma.vmem_to_hbm [thread:$0]  %s1198, 512, %s1196, %s1167, 256, 256, 16
        $region60: #{tpu_custom_call.1} parent=39 // pred_fallthru
          _
      $region40: #{tpu_custom_call.1} parent=5 // pred_fallthru
        _
      %p1204 = scmp.le.s32.totalorder 2, %s23
      // Predicated region
      $region61: #{tpu_custom_call.1} parent=5 // pred_check
        %p1205 = pneg %p1204
      $region62: #{tpu_custom_call.1} parent=5 // pred_check_branch
        %1207 = sbr.rel (%p1205) target = $region64
      $region63: #{tpu_custom_call.1} parent=5 // pred_region
        %s1208 = ssub.s32 %s23, 2
        // Predicated region
        $region65: #{tpu_custom_call.1} parent=63 // pred_check
          %p1209 = pneg %p162
        $region66: #{tpu_custom_call.1} parent=63 // pred_check_branch
          %1211 = sbr.rel (%p1209) target = $region68
        $region67: #{tpu_custom_call.1} parent=63 // pred_region
          %s1212 = sand.u32 %s147, 1
          %s1213 = scalar_lea.sflag [#allocation6], %s1212
          %s1214 = sand.u32 %s147, 1
          %s1215 = smul.addr %s1214, 16
          %s1216 = scalar_lea.vmem [#allocation10], %s1215
          %1217 = dma.done %s1213, 256
        $region68: #{tpu_custom_call.1} parent=63 // pred_fallthru
          _
        // Predicated region
        $region69: #{tpu_custom_call.1} parent=63 // pred_check
          %p1218 = pneg %p188
        $region70: #{tpu_custom_call.1} parent=63 // pred_check_branch
          %1220 = sbr.rel (%p1218) target = $region72
        $region71: #{tpu_custom_call.1} parent=63 // pred_region
          %s1221 = sand.u32 %s173, 1
          %s1222 = scalar_lea.sflag [#allocation12], %s1221
          %s1223 = sand.u32 %s173, 1
          %s1224 = smul.addr %s1223, 32
          %s1225 = scalar_lea.vmem [#allocation11], %s1224
          %1226 = dma.done %s1222, 512
        $region72: #{tpu_custom_call.1} parent=63 // pred_fallthru
          _
      $region64: #{tpu_custom_call.1} parent=5 // pred_fallthru
        _
    $region6: #{tpu_custom_call.1} parent=1 // loop_footer
      %s27 = sadd.s32 1, %s23
    $region7: #{tpu_custom_call.1} parent=1 // loop_footer_branch
      %22 = sbr.rel target = $region3
    $region8: #{tpu_custom_call.1} parent=1 // loop_exit
      _
    %1227 = vsyncpa [#allocation5], 1
    %s1228 = scalar_lea.sflag [#allocation5], 1
    %1229 = vsyncpa %s1228, 1
    %1230 = vsyncpa [#allocation8], 1
    %1231 = vsyncpa [#allocation6], 1
    %s1232 = scalar_lea.sflag [#allocation6], 1
    %1233 = vsyncpa %s1232, 1
    %1234 = vsyncpa [#allocation12], 1
    %s1235 = scalar_lea.sflag [#allocation12], 1
    %1236 = vsyncpa %s1235, 1

</llo_original>
